<compile_context>
chip_gen: v7x
topology: tpu7x:2x2x1
jax: 0.10.0
libtpu: 0.0.40
codegen_flags: <defaults>
</compile_context>

<pallas_src>
import functools

import jax
import jax.numpy as jnp
from jax.experimental import pallas as pl
from jax.experimental.pallas import tpu as pltpu


def _round_up(a, b):
    return (a + b - 1) // b * b


def _hidden_layer_kernel(x_ref, w_ref, o_ref, acc_ref):
    """Grid step (i, j, k): accumulate x[i,k] @ w[k,j]; finalize with sin()."""
    k = pl.program_id(2)

    @pl.when(k == 0)
    def _():
        acc_ref[...] = jnp.zeros_like(acc_ref)

    acc_ref[...] += jnp.dot(
        x_ref[...], w_ref[...], preferred_element_type=jnp.float32
    )

    @pl.when(k == pl.num_programs(2) - 1)
    def _():
        # gofx == sin, applied exactly once per output element.
        o_ref[...] = jnp.sin(acc_ref[...]).astype(o_ref.dtype)


@functools.partial(jax.jit, static_argnames=("tm", "tn", "tk", "use_bf16"))
def hidden_layer(x, w, *, tm=512, tn=512, tk=1024, use_bf16=False):
    """Pallas wrapper for HiddenLayer.forward: sin(Linear(x)), bias=False.

    x: (batch, in_features) float32
    w: (in_features, out_features) float32   (== PyTorch weight.T)
    """
    batch, in_features = x.shape
    in_f2, out_features = w.shape
    assert in_features == in_f2

    # Clamp tiles to the (padded) problem size while keeping TPU layout rules:
    # second-to-last dims multiples of 8, last dims multiples of 128.
    tm = min(tm, _round_up(batch, 8))
    tn = min(tn, _round_up(out_features, 128))
    tk = min(tk, _round_up(in_features, 128))

    M = _round_up(batch, tm)
    N = _round_up(out_features, tn)
    K = _round_up(in_features, tk)

    # Zero-pad to tile multiples only if needed (zero rows/cols contribute
    # nothing to x @ w, so the math is unchanged).
    if (M, K) != (batch, in_features):
        x = jnp.pad(x, ((0, M - batch), (0, K - in_features)))
    if (K, N) != (in_features, out_features):
        w = jnp.pad(w, ((0, K - in_features), (0, N - out_features)))

    if use_bf16:
        x = x.astype(jnp.bfloat16)
        w = w.astype(jnp.bfloat16)

    grid = (M // tm, N // tn, K // tk)

    out_p = pl.pallas_call(
        _hidden_layer_kernel,
        out_shape=jax.ShapeDtypeStruct((M, N), jnp.float32),
        grid_spec=pltpu.PrefetchScalarGridSpec(
            num_scalar_prefetch=0,
            grid=grid,
            in_specs=[
                # x tile: varies with batch tile i and reduction step k
                pl.BlockSpec((tm, tk), lambda i, j, k: (i, k)),
                # weight tile: streamed over (k, j); never fully resident
                pl.BlockSpec((tk, tn), lambda i, j, k: (k, j)),
            ],
            # output tile is resident across the k axis (accumulator pattern)
            out_specs=pl.BlockSpec((tm, tn), lambda i, j, k: (i, j)),
            scratch_shapes=[pltpu.VMEM((tm, tn), jnp.float32)],
        ),
        compiler_params=pltpu.CompilerParams(
            dimension_semantics=("parallel", "parallel", "arbitrary"),
            vmem_limit_bytes=48 * 1024 * 1024,
        ),
        cost_estimate=pl.CostEstimate(
            flops=2 * M * N * K,
            transcendentals=M * N,
            bytes_accessed=4 * (M * K + K * N + M * N),
        ),
    )(x, w)

    return out_p[:batch, :out_features]


if __name__ == "__main__":
    key = jax.random.PRNGKey(0)
    k_x, k_w = jax.random.split(key)

    batch, in_features, out_features = 16, 32, 64

    # deterministic parameter init matching nn.Linear.weight.normal_(0, 0.01)
    # PyTorch weight has shape (out, in); we store its transpose (in, out).
    w_torch_layout = 0.01 * jax.random.normal(
        k_w, (out_features, in_features), dtype=jnp.float32
    )
    w = w_torch_layout.T  # (in_features, out_features)

    x = jax.random.normal(k_x, (batch, in_features), dtype=jnp.float32)

    out = hidden_layer(x, w)
    out = jax.block_until_ready(out)

    # reference check in plain JAX
    ref = jnp.sin(x @ w)
    assert out.shape == (batch, out_features)
    assert jnp.allclose(out, ref, atol=1e-5, rtol=1e-5)

    print("KERNEL_OK")
</pallas_src>

<mosaic_0001>
module attributes {stable_mosaic.version = 11 : i64} {
  func.func @_hidden_layer_kernel(%arg0: i32, %arg1: i32, %arg2: i32, %arg3: memref<16x128xf32, #tpu.memory_space<vmem>>, %arg4: memref<128x128xf32, #tpu.memory_space<vmem>>, %arg5: memref<16x128xf32, #tpu.memory_space<vmem>>, %arg6: memref<16x128xf32, #tpu.memory_space<vmem>>) attributes {dimension_semantics = [#tpu.dimension_semantics<parallel>, #tpu.dimension_semantics<parallel>, #tpu.dimension_semantics<arbitrary>], iteration_bounds = array<i64: 1, 1, 1>, scalar_prefetch = 0 : i64, scratch_operands = 1 : i64, tpu.core_type = #tpu.core_type<tc>, window_params = [{transform_indices = @transform_0, window_bounds = array<i64: 16, 128>}, {transform_indices = @transform_1, window_bounds = array<i64: 128, 128>}, {transform_indices = @transform_2, window_bounds = array<i64: 16, 128>}]} {
    %c0_i32 = arith.constant 0 : i32
    %0 = arith.cmpi eq, %arg2, %c0_i32 : i32
    %1 = arith.extui %0 : i1 to i32
    %c0_i32_0 = arith.constant 0 : i32
    %2 = arith.cmpi ne, %1, %c0_i32_0 : i32
    scf.if %2 {
      %cst_10 = arith.constant 0.000000e+00 : f32
      %12 = vector.broadcast %cst_10 : f32 to vector<16x128xf32>
      %c0_11 = arith.constant 0 : index
      %c0_12 = arith.constant 0 : index
      %13 = vector.load %arg6[%c0_11, %c0_12] : memref<16x128xf32, #tpu.memory_space<vmem>>, vector<16x128xf32>
      tpu.vector_store %arg6[%c0_11, %c0_12], %12 {strides = array<i32>} : memref<16x128xf32, #tpu.memory_space<vmem>>, vector<16x128xf32>,
    } else {
    }
    %c0 = arith.constant 0 : index
    %c0_1 = arith.constant 0 : index
    %3 = vector.load %arg6[%c0, %c0_1] : memref<16x128xf32, #tpu.memory_space<vmem>>, vector<16x128xf32>
    %c0_2 = arith.constant 0 : index
    %c0_3 = arith.constant 0 : index
    %4 = vector.load %arg3[%c0_2, %c0_3] : memref<16x128xf32, #tpu.memory_space<vmem>>, vector<16x128xf32>
    %c0_4 = arith.constant 0 : index
    %c0_5 = arith.constant 0 : index
    %5 = vector.load %arg4[%c0_4, %c0_5] : memref<128x128xf32, #tpu.memory_space<vmem>>, vector<128x128xf32>
    %cst = arith.constant dense<0.000000e+00> : vector<16x128xf32>
    %6 = tpu.matmul %4, %5, %cst {dimension_numbers = #tpu.dot_dimension_numbers<[1], [0], [0], [1], [0, 0, 1, 1], [], []>} : vector<16x128xf32>, vector<128x128xf32>, vector<16x128xf32> -> vector<16x128xf32>
    %7 = arith.addf %3, %6 : vector<16x128xf32>
    %c0_6 = arith.constant 0 : index
    %c0_7 = arith.constant 0 : index
    %8 = vector.load %arg6[%c0_6, %c0_7] : memref<16x128xf32, #tpu.memory_space<vmem>>, vector<16x128xf32>
    tpu.vector_store %arg6[%c0_6, %c0_7], %7 {strides = array<i32>} : memref<16x128xf32, #tpu.memory_space<vmem>>, vector<16x128xf32>,
    %c0_i32_8 = arith.constant 0 : i32
    %9 = arith.cmpi eq, %arg2, %c0_i32_8 : i32
    %10 = arith.extui %9 : i1 to i32
    %c0_i32_9 = arith.constant 0 : i32
    %11 = arith.cmpi ne, %10, %c0_i32_9 : i32
    scf.if %11 {
      %c0_10 = arith.constant 0 : index
      %c0_11 = arith.constant 0 : index
      %12 = vector.load %arg6[%c0_10, %c0_11] : memref<16x128xf32, #tpu.memory_space<vmem>>, vector<16x128xf32>
      %13 = math.sin %12 : vector<16x128xf32>
      %c0_12 = arith.constant 0 : index
      %c0_13 = arith.constant 0 : index
      %14 = vector.load %arg5[%c0_12, %c0_13] : memref<16x128xf32, #tpu.memory_space<vmem>>, vector<16x128xf32>
      tpu.vector_store %arg5[%c0_12, %c0_13], %13 {strides = array<i32>} : memref<16x128xf32, #tpu.memory_space<vmem>>, vector<16x128xf32>,
    } else {
    }
    return
  }
  func.func @transform_0(%arg0: i32, %arg1: i32, %arg2: i32) -> (i32, i32) {
    %c0_i32 = arith.constant 0 : i32
    return %arg0, %arg2 : i32, i32
  }
  func.func @transform_1(%arg0: i32, %arg1: i32, %arg2: i32) -> (i32, i32) {
    %c0_i32 = arith.constant 0 : i32
    return %arg2, %arg1 : i32, i32
  }
  func.func @transform_2(%arg0: i32, %arg1: i32, %arg2: i32) -> (i32, i32) {
    %c0_i32 = arith.constant 0 : i32
    return %arg0, %arg1 : i32, i32
  }
}

</mosaic_0001>

<llo_original>
// kernel: hidden_layer.1
$region0: #{hidden_layer.1}
  #allocation0 [shape = 'u32[]', space=smem, size = 0x4, offset = 0x4, fixed_abs, tag = 'smem constant byte address 0x4 - core index']
  #allocation1 [shape = 'u32[144,128]{1,0:T(1,128)}', space=vmem, size = 0x12000, scoped, tag = 'internal scratch']
  #allocation2 [shape = 'f32[16,128]{1,0:T(8,128)}', space=vmem, size = 0x2000, scoped, tag = 'scratch operand']
  %s0 = inlined_call_operand.vmem [shape: f32[16,128], index: 0, kind: input, shape index: {}]
  %s1 = inlined_call_operand.vmem [shape: f32[128,128], index: 1, kind: input, shape index: {}]
  %s2 = inlined_call_operand.hbm [shape: f32[16,128], index: 2, kind: output, shape index: {}]
  %s3 = sld [smem:[#allocation0]]
  $region26: #{hidden_layer.1} parent=0
    _
  %s5 = ssub.s32 1, %s3
  %s6 = scalar_select 0, %s5, %s3
  $region1: #{hidden_layer.1} parent=0
    #allocation3 [shape = 'u8[8192]{0}', space=vmem, size = 0x2000, scoped, tag = 'output window, operand 0, single buffered']
    #allocation4 [shape = 's32[1]{0}', space=sflag, size = 0x4, scoped, tag = 'scoped memory for hidden_layer.1']
    %7 = vsyncpa [#allocation4], 0
    // Predicated region
    $region2: #{hidden_layer.1} parent=1 // pred_check
      _
    $region3: #{hidden_layer.1} parent=1 // pred_check_branch
      %9 = sbr.rel (0) target = $region5
    $region4: #{hidden_layer.1} parent=1 // pred_region
      _
    $region5: #{hidden_layer.1} parent=1 // pred_fallthru
      _
    // Predicated region
    $region6: #{hidden_layer.1} parent=1 // pred_check
      _
    $region7: #{hidden_layer.1} parent=1 // pred_check_branch
      %11 = sbr.rel (0) target = $region9
    $region8: #{hidden_layer.1} parent=1 // pred_region
      _
    $region9: #{hidden_layer.1} parent=1 // pred_fallthru
      _
    %p12 = scmp.eq.s32.totalorder 0, 0
    // Predicated region
    $region10: #{hidden_layer.1} parent=1 // pred_check
      %p13 = pneg %p12
    $region11: #{hidden_layer.1} parent=1 // pred_check_branch
      %15 = sbr.rel (%p13) target = $region13
    $region12: #{hidden_layer.1} parent=1 // pred_region
      %16 = vst [vmem:[#allocation2] sm:$0xff] 0.0
      %17 = vst [vmem:[#allocation2 + $0x8] sm:$0xff] 0.0
    $region13: #{hidden_layer.1} parent=1 // pred_fallthru
      _
    %v18 = vld [vmem:[#allocation2] sm:$0xff]
    %v19 = vld [vmem:[#allocation2 + $0x8] sm:$0xff]
    %v20 = vld [vmem:[%s0] sm:$0xff]
    %v21 = vld [vmem:[%s0 + $0x8] sm:$0xff]
    %v22 = vld [vmem:[%s1] sm:$0xff]
    %v23 = vld [vmem:[%s1 + $0x8] sm:$0xff]
    %v24 = vld [vmem:[%s1 + $0x10] sm:$0xff]
    %v25 = vld [vmem:[%s1 + $0x18] sm:$0xff]
    %v26 = vld [vmem:[%s1 + $0x20] sm:$0xff]
    %v27 = vld [vmem:[%s1 + $0x28] sm:$0xff]
    %v28 = vld [vmem:[%s1 + $0x30] sm:$0xff]
    %v29 = vld [vmem:[%s1 + $0x38] sm:$0xff]
    %v30 = vld [vmem:[%s1 + $0x40] sm:$0xff]
    %v31 = vld [vmem:[%s1 + $0x48] sm:$0xff]
    %v32 = vld [vmem:[%s1 + $0x50] sm:$0xff]
    %v33 = vld [vmem:[%s1 + $0x58] sm:$0xff]
    %v34 = vld [vmem:[%s1 + $0x60] sm:$0xff]
    %v35 = vld [vmem:[%s1 + $0x68] sm:$0xff]
    %v36 = vld [vmem:[%s1 + $0x70] sm:$0xff]
    %v37 = vld [vmem:[%s1 + $0x78] sm:$0xff]
    %38 = vmatprep.subr.mxu0 0.0
    %39 = vmatpush1.msra.mxu0 %v22
    %40 = vmatprep.subr.mxu0 0.0
    %41 = vmatpush1.msra.mxu0 %v23
    %42 = vmatprep.subr.mxu0 0.0
    %43 = vmatpush1.msra.mxu0 %v24
    %44 = vmatprep.subr.mxu0 0.0
    %45 = vmatpush1.msra.mxu0 %v25
    %46 = vmatprep.subr.mxu0 0.0
    %47 = vmatpush1.msra.mxu0 %v26
    %48 = vmatprep.subr.mxu0 0.0
    %49 = vmatpush1.msra.mxu0 %v27
    %50 = vmatprep.subr.mxu0 0.0
    %51 = vmatpush1.msra.mxu0 %v28
    %52 = vmatprep.subr.mxu0 0.0
    %53 = vmatpush1.msra.mxu0 %v29
    %54 = vmatprep.subr.mxu0 0.0
    %55 = vmatpush1.msra.mxu0 %v30
    %56 = vmatprep.subr.mxu0 0.0
    %57 = vmatpush1.msra.mxu0 %v31
    %58 = vmatprep.subr.mxu0 0.0
    %59 = vmatpush1.msra.mxu0 %v32
    %60 = vmatprep.subr.mxu0 0.0
    %61 = vmatpush1.msra.mxu0 %v33
    %62 = vmatprep.subr.mxu0 0.0
    %63 = vmatpush1.msra.mxu0 %v34
    %64 = vmatprep.subr.mxu0 0.0
    %65 = vmatpush1.msra.mxu0 %v35
    %66 = vmatprep.subr.mxu0 0.0
    %67 = vmatpush1.msra.mxu0 %v36
    %68 = vmatprep.subr.mxu0 0.0
    %69 = vmatpush1.msra.mxu0 %v37
    %70 = vmatprep.subr.mxu0 0.0
    %71 = vmatpush1.msra.mxu0 0.0
    %72 = vmatprep.subr.mxu0 0.0
    %73 = vmatpush1.msra.mxu0 0.0
    %74 = vmatprep.subr.mxu0 0.0
    %75 = vmatpush1.msra.mxu0 0.0
    %76 = vmatprep.subr.mxu0 0.0
    %77 = vmatpush1.msra.mxu0 0.0
    %78 = vmatprep.subr.mxu0 0.0
    %79 = vmatpush1.msra.mxu0 0.0
    %80 = vmatprep.subr.mxu0 0.0
    %81 = vmatpush1.msra.mxu0 0.0
    %82 = vmatprep.subr.mxu0 0.0
    %83 = vmatpush1.msra.mxu0 0.0
    %84 = vmatprep.subr.mxu0 0.0
    %85 = vmatpush1.msra.mxu0 0.0
    %86 = vmatprep.subr.mxu0 0.0
    %87 = vmatpush1.msra.mxu0 0.0
    %88 = vmatprep.subr.mxu0 0.0
    %89 = vmatpush1.msra.mxu0 0.0
    %90 = vmatprep.subr.mxu0 0.0
    %91 = vmatpush1.msra.mxu0 0.0
    %92 = vmatprep.subr.mxu0 0.0
    %93 = vmatpush1.msra.mxu0 0.0
    %94 = vmatprep.subr.mxu0 0.0
    %95 = vmatpush1.msra.mxu0 0.0
    %96 = vmatprep.subr.mxu0 0.0
    %97 = vmatpush1.msra.mxu0 0.0
    %98 = vmatprep.subr.mxu0 0.0
    %99 = vmatpush1.msra.mxu0 0.0
    %100 = vmatprep.subr.mxu0 0.0
    %101 = vmatpush1.msra.mxu0 0.0
    %102 = vmatprep.mubr.f32.mxu0 0.0
    %103 = vmatmul.mubr.f32.gmra.mrb[0].mxu0 %v20
    %v104 = vpop.f32.mrb[0].mxu0
    %v105 = vadd.f32 0.0, %v104
    %v106 = vpop.f32.mrb[0].mxu0
    %107 = vmatprep.mubr.f32.mxu0 0.0
    %108 = vmatmul.mubr.f32.gmra.mrb[0].mxu0 %v21
    %v109 = vpop.f32.mrb[0].mxu0
    %v110 = vadd.f32 0.0, %v109
    %v111 = vpop.f32.mrb[0].mxu0
    %112 = vdwg.mxu0
    %v113 = vadd.f32 %v18, %v105
    %v114 = vadd.f32 %v19, %v110
    %115 = vst [vmem:[#allocation2] sm:$0xff] %v113
    %116 = vst [vmem:[#allocation2 + $0x8] sm:$0xff] %v114
    // Predicated region
    $region14: #{hidden_layer.1} parent=1 // pred_check
      %p117 = pneg %p12
    $region15: #{hidden_layer.1} parent=1 // pred_check_branch
      %119 = sbr.rel (%p117) target = $region17
    $region16: #{hidden_layer.1} parent=1 // pred_region
      %v120 = vld [vmem:[#allocation2] sm:$0xff]
      %v121 = vld [vmem:[#allocation2 + $0x8] sm:$0xff]
      %v122 = vand.u32 2147483647, %v120
      %vm123 = vcmp.le.f32.partialorder %v122, 0.7853982
      %vm124 = vcmp.lt.s32.totalorder %v120, 0
      %v125 = vand.u32 %v120, 2139095040
      %v126 = vshrl.u32 %v125, 23
      %v127 = vsub.s32 %v126, 127
      %v128 = vand.u32 2147483647, %v120
      %v129 = vand.u32 %v128, 8388607
      %v130 = vor.u32 %v129, 8388608
      %v131 = vsub.s32 0, %v130
      %v132 = vadd.s32 %v127, 1
      %vm133 = vcmp.gt.s32.totalorder %v132, 0
      %v134 = vsel %vm133, %v132, 0
      %v135 = vshrl.u32 %v134, 5
      %v136 = vand.u32 %v134, 31
      %v137 = vsub.s32 32, %v136
      %v138 = vshrl.u32 683565275, %v137
      %v139 = vshll.u32 683565275, %v136
      %v140 = vshrl.u32 2475754826, %v137
      %v141 = vor.u32 %v139, %v140
      %v142 = vshll.u32 2475754826, %v136
      %v143 = vshrl.u32 2131351028, %v137
      %v144 = vor.u32 %v142, %v143
      %v145 = vshll.u32 2131351028, %v136
      %v146 = vshrl.u32 2102212464, %v137
      %v147 = vor.u32 %v145, %v146
      %v148 = vshll.u32 2102212464, %v136
      %v149 = vshrl.u32 920167782, %v137
      %v150 = vor.u32 %v148, %v149
      %v151 = vshll.u32 920167782, %v136
      %v152 = vshrl.u32 1326507024, %v137
      %v153 = vor.u32 %v151, %v152
      %vm154 = vcmp.lt.s32.totalorder %v135, 1
      %vm155 = vcmp.lt.s32.totalorder %v135, 2
      %vm156 = vcmp.lt.s32.totalorder %v135, 3
      %vm157 = vcmp.lt.s32.totalorder %v135, 4
      %v158 = vsel %vm154, %v138, %v141
      %v159 = vsel %vm157, %v147, 2102212464
      %v160 = vsel %vm156, %v144, %v159
      %v161 = vsel %vm155, %v158, %v160
      %v162 = vsel %vm154, %v141, %v144
      %v163 = vsel %vm157, %v150, 920167782
      %v164 = vsel %vm156, %v147, %v163
      %v165 = vsel %vm155, %v162, %v164
      %v166 = vsel %vm154, %v144, %v147
      %v167 = vsel %vm157, %v153, 1326507024
      %v168 = vsel %vm156, %v150, %v167
      %v169 = vsel %vm155, %v166, %v168
      %v170 = vshll.u32 %v130, 8
      %v171 = vmul.u32.u64.compose %v170, %v169
      %v172 = vextract.low.u32 %v171
      %v173 = vextract.high.u32 %v171
      %v174 = vmul.u32.u64.compose %v170, %v165
      %v175 = vextract.low.u32 %v174
      %v176 = vextract.high.u32 %v174
      %v177 = vmul.u32 %v170, %v161
      %v178 = vadd.s32 %v173, %v175
      %vm179 = vc.u32 %v173, %v175
      %v180 = vadd.s32 %v176, 1
      %v181 = vsel %vm179, %v180, %v176
      %v182 = vadd.s32 %v177, %v181
      %v183 = vadd.s32 %v182, 536870912
      %v184 = vshrl.u32 %v183, 30
      %v185 = vshll.u32 %v184, 30
      %v186 = vsub.s32 %v182, %v185
      %vm187 = vcmp.lt.s32.totalorder %v186, 0
      %v188 = vsub.s32 0, %v186
      %v189 = vsel %vm187, %v188, %v186
      %v190 = vclz %v189
      %v191 = vsub.s32 %v190, 2
      %vm192 = vcmp.gt.s32.totalorder 0, %v191
      %v193 = vsel %vm192, 0, %v191
      %v194 = vsub.s32 32, %v193
      %v195 = vshll.u32 %v186, %v193
      %v196 = vshrl.u32 %v178, %v194
      %v197 = vor.u32 %v195, %v196
      %v198 = vsub.s32 4294967266, %v193
      %v199 = vadd.s32 %v198, 127
      %v200 = vshll.u32 %v199, 23
      %v201 = vor.u32 4788187, %v200
      %v202 = vand.u32 2147483647, %v201
      %v204 = vcvt.s32.f32 %v197
      %v205 = vmul.f32 %v204, %v202
      %v206 = vxor.u32 %v205, 2147483648
      %v207 = vsel %vm124, %v206, %v205
      %v208 = vsub.s32 4, %v184
      %v209 = vsel %vm124, %v208, %v184
      %v210 = vsel %vm123, %v120, %v207
      %v211 = vsel %vm123, 0, %v209
      %v212 = vcosq.f32.pop %v210
      %v213 = vsinq.f32.pop %v210
      %vm214 = vweird.f32 %v120
      %v215 = vadd.s32 %v211, 3
      %v216 = vand.u32 %v215, 3
      %vm217 = vcmp.lt.s32.totalorder %v216, 2
      %vm218 = vcmp.eq.s32.totalorder %v216, 0
      %v219 = vxor.u32 %v213, 2147483648
      %v220 = vsel %vm218, %v212, %v219
      %vm221 = vcmp.eq.s32.totalorder %v216, 2
      %v222 = vxor.u32 %v212, 2147483648
      %v223 = vsel %vm221, %v222, %v213
      %v224 = vsel %vm217, %v220, %v223
      %v225 = vsel %vm214, nan, %v224
      %v226 = vand.u32 2147483647, %v121
      %vm227 = vcmp.le.f32.partialorder %v226, 0.7853982
      %vm228 = vcmp.lt.s32.totalorder %v121, 0
      %v229 = vand.u32 %v121, 2139095040
      %v230 = vshrl.u32 %v229, 23
      %v231 = vsub.s32 %v230, 127
      %v232 = vand.u32 2147483647, %v121
      %v233 = vand.u32 %v232, 8388607
      %v234 = vor.u32 %v233, 8388608
      %v235 = vsub.s32 0, %v234
      %v236 = vadd.s32 %v231, 1
      %vm237 = vcmp.gt.s32.totalorder %v236, 0
      %v238 = vsel %vm237, %v236, 0
      %v239 = vshrl.u32 %v238, 5
      %v240 = vand.u32 %v238, 31
      %v241 = vsub.s32 32, %v240
      %v242 = vshrl.u32 683565275, %v241
      %v243 = vshll.u32 683565275, %v240
      %v244 = vshrl.u32 2475754826, %v241
      %v245 = vor.u32 %v243, %v244
      %v246 = vshll.u32 2475754826, %v240
      %v247 = vshrl.u32 2131351028, %v241
      %v248 = vor.u32 %v246, %v247
      %v249 = vshll.u32 2131351028, %v240
      %v250 = vshrl.u32 2102212464, %v241
      %v251 = vor.u32 %v249, %v250
      %v252 = vshll.u32 2102212464, %v240
      %v253 = vshrl.u32 920167782, %v241
      %v254 = vor.u32 %v252, %v253
      %v255 = vshll.u32 920167782, %v240
      %v256 = vshrl.u32 1326507024, %v241
      %v257 = vor.u32 %v255, %v256
      %vm258 = vcmp.lt.s32.totalorder %v239, 1
      %vm259 = vcmp.lt.s32.totalorder %v239, 2
      %vm260 = vcmp.lt.s32.totalorder %v239, 3
      %vm261 = vcmp.lt.s32.totalorder %v239, 4
      %v262 = vsel %vm258, %v242, %v245
      %v263 = vsel %vm261, %v251, 2102212464
      %v264 = vsel %vm260, %v248, %v263
      %v265 = vsel %vm259, %v262, %v264
      %v266 = vsel %vm258, %v245, %v248
      %v267 = vsel %vm261, %v254, 920167782
      %v268 = vsel %vm260, %v251, %v267
      %v269 = vsel %vm259, %v266, %v268
      %v270 = vsel %vm258, %v248, %v251
      %v271 = vsel %vm261, %v257, 1326507024
      %v272 = vsel %vm260, %v254, %v271
      %v273 = vsel %vm259, %v270, %v272
      %v274 = vshll.u32 %v234, 8
      %v275 = vmul.u32.u64.compose %v274, %v273
      %v276 = vextract.low.u32 %v275
      %v277 = vextract.high.u32 %v275
      %v278 = vmul.u32.u64.compose %v274, %v269
      %v279 = vextract.low.u32 %v278
      %v280 = vextract.high.u32 %v278
      %v281 = vmul.u32 %v274, %v265
      %v282 = vadd.s32 %v277, %v279
      %vm283 = vc.u32 %v277, %v279
      %v284 = vadd.s32 %v280, 1
      %v285 = vsel %vm283, %v284, %v280
      %v286 = vadd.s32 %v281, %v285
      %v287 = vadd.s32 %v286, 536870912
      %v288 = vshrl.u32 %v287, 30
      %v289 = vshll.u32 %v288, 30
      %v290 = vsub.s32 %v286, %v289
      %vm291 = vcmp.lt.s32.totalorder %v290, 0
      %v292 = vsub.s32 0, %v290
      %v293 = vsel %vm291, %v292, %v290
      %v294 = vclz %v293
      %v295 = vsub.s32 %v294, 2
      %vm296 = vcmp.gt.s32.totalorder 0, %v295
      %v297 = vsel %vm296, 0, %v295
      %v298 = vsub.s32 32, %v297
      %v299 = vshll.u32 %v290, %v297
      %v300 = vshrl.u32 %v282, %v298
      %v301 = vor.u32 %v299, %v300
      %v302 = vsub.s32 4294967266, %v297
      %v303 = vadd.s32 %v302, 127
      %v304 = vshll.u32 %v303, 23
      %v305 = vor.u32 4788187, %v304
      %v306 = vand.u32 2147483647, %v305
      %v308 = vcvt.s32.f32 %v301
      %v309 = vmul.f32 %v308, %v306
      %v310 = vxor.u32 %v309, 2147483648
      %v311 = vsel %vm228, %v310, %v309
      %v312 = vsub.s32 4, %v288
      %v313 = vsel %vm228, %v312, %v288
      %v314 = vsel %vm227, %v121, %v311
      %v315 = vsel %vm227, 0, %v313
      %v316 = vcosq.f32.pop %v314
      %v317 = vsinq.f32.pop %v314
      %vm318 = vweird.f32 %v121
      %v319 = vadd.s32 %v315, 3
      %v320 = vand.u32 %v319, 3
      %vm321 = vcmp.lt.s32.totalorder %v320, 2
      %vm322 = vcmp.eq.s32.totalorder %v320, 0
      %v323 = vxor.u32 %v317, 2147483648
      %v324 = vsel %vm322, %v316, %v323
      %vm325 = vcmp.eq.s32.totalorder %v320, 2
      %v326 = vxor.u32 %v316, 2147483648
      %v327 = vsel %vm325, %v326, %v317
      %v328 = vsel %vm321, %v324, %v327
      %v329 = vsel %vm318, nan, %v328
      %330 = vst [vmem:[#allocation3] sm:$0xff] %v225
      %331 = vst [vmem:[#allocation3 + $0x8] sm:$0xff] %v329
    $region17: #{hidden_layer.1} parent=1 // pred_fallthru
      _
    // Predicated region
    $region18: #{hidden_layer.1} parent=1 // pred_check
      _
    $region19: #{hidden_layer.1} parent=1 // pred_check_branch
      %333 = sbr.rel (0) target = $region21
    $region20: #{hidden_layer.1} parent=1 // pred_region
      %s335 = ssub.s32 256, 256
      %336 = vsyncadd [#allocation4], %s335
      %s337 = sshll.u32 [#allocation3], 4
      %s338 = int_to_ptr.vmem [resolvable:$true] %s337
      %343 = dma.vmem_to_hbm [thread:$0]  %s338, 256, %s2, [#allocation4], 128, 128, 8
    $region21: #{hidden_layer.1} parent=1 // pred_fallthru
      _
    // Predicated region
    $region22: #{hidden_layer.1} parent=1 // pred_check
      _
    $region23: #{hidden_layer.1} parent=1 // pred_check_branch
      %345 = sbr.rel (0) target = $region25
    $region24: #{hidden_layer.1} parent=1 // pred_region
      %346 = dma.done [#allocation4], 256
    $region25: #{hidden_layer.1} parent=1 // pred_fallthru
      _
    %347 = vsyncpa [#allocation4], 1

</llo_original>
